<compile_context>
chip_gen: v7x
topology: tpu7x:2x2x1
jax: 0.10.0
libtpu: 0.0.40
codegen_flags: <defaults>
</compile_context>

<pallas_src>
import jax
import jax.numpy as jnp
from jax.experimental import pallas as pl
from jax.experimental.pallas import tpu as pltpu

PAD = 128      # lane-dense padded feature width
HIDDEN = 40    # self.hidden_size in the module
H1 = 80        # fc1 / fc3 output width in the module
TB_CAP = 512   # batch-tile cap (sweep 512-1024); fits every generation's scoped VMEM


def _round_up(n, m):
    return ((n + m - 1) // m) * m


# ----------------------------- kernel ---------------------------------------


def cvae_kernel(a_ref, w1_ref, w2_ref, w3_ref, w4_ref, out_ref):
    a = a_ref[...]                       # [TB,128] f32: [eps | x | labels | 0.. | 1]
    a_bf = a.astype(jnp.bfloat16)

    # encode: fc1 (bias folded into row 127 via the constant-1 lane) + relu
    h1 = jnp.maximum(
        jnp.dot(a_bf, w1_ref[...], preferred_element_type=jnp.float32), 0.0)

    # fused mu||logvar head: one [128,256] matmul, biases in row 127
    ml = jnp.dot(h1.astype(jnp.bfloat16), w2_ref[...],
                 preferred_element_type=jnp.float32)
    mu, logvar = ml[:, :PAD], ml[:, PAD:]

    # reparameterize: eps sits in lanes [0:HIDDEN] of `a`.  The leaked x/label lanes and
    # the constant-1 lane survive into z but hit fc3's zero pad rows (the 1-lane hits
    # fc3's bias row, which is exactly what carries b3), so decode output is unchanged.
    std = jnp.exp(0.5 * logvar)          # EUP; pad lanes give exp(0) = 1
    z = a * std + mu

    # decode: fc3 + relu, fc4 (labels intentionally unused, matching the PyTorch code)
    h3 = jnp.maximum(
        jnp.dot(z.astype(jnp.bfloat16), w3_ref[...],
                preferred_element_type=jnp.float32), 0.0)
    out_ref[...] = jnp.dot(h3.astype(jnp.bfloat16), w4_ref[...],
                           preferred_element_type=jnp.float32).astype(out_ref.dtype)


# ----------------------------- packing (hoisted, once per model) -------------


def pack_params(p, input_size, cond_size):
    """Fuse / zero-pad / bias-fold the logical (torch-shaped) params, ONCE per model.

    Layout invariants the kernel relies on:
      * w1 rows [0:HIDDEN] are zero        -> eps lanes don't feed fc1
      * w3 rows [HIDDEN:127] are zero      -> x/label lanes leaking into z vanish
      * row 127 of w1/w3 has a 1 at column 127 -> constant bias lane propagates
        through relu (relu(1)==1) and carries every layer's bias.
    """
    assert HIDDEN + input_size + cond_size <= PAD - 1, "features must fit in 127 lanes"
    assert H1 <= PAD - 1 and HIDDEN <= PAD - 1 and input_size <= PAD

    x0 = HIDDEN
    c0 = HIDDEN + input_size

    w1 = jnp.zeros((PAD, PAD), jnp.float32)
    w1 = w1.at[x0:x0 + input_size, :H1].set(p["w1"][:input_size])
    w1 = w1.at[c0:c0 + cond_size, :H1].set(p["w1"][input_size:])
    w1 = w1.at[PAD - 1, :H1].set(p["b1"][0])
    w1 = w1.at[PAD - 1, PAD - 1].set(1.0)

    w2 = jnp.zeros((PAD, 2 * PAD), jnp.float32)          # mu || logvar head
    w2 = w2.at[:H1, :HIDDEN].set(p["w21"])
    w2 = w2.at[:H1, PAD:PAD + HIDDEN].set(p["w22"])
    w2 = w2.at[PAD - 1, :HIDDEN].set(p["b21"][0])
    w2 = w2.at[PAD - 1, PAD:PAD + HIDDEN].set(p["b22"][0])

    w3 = jnp.zeros((PAD, PAD), jnp.float32)
    w3 = w3.at[:HIDDEN, :H1].set(p["w3"])
    w3 = w3.at[PAD - 1, :H1].set(p["b3"][0])
    w3 = w3.at[PAD - 1, PAD - 1].set(1.0)

    w4 = jnp.zeros((PAD, PAD), jnp.float32)
    w4 = w4.at[:H1, :input_size].set(p["w4"])
    w4 = w4.at[PAD - 1, :input_size].set(p["b4"][0])

    # bf16 storage halves weight HBM/VMEM bytes; matmuls run bf16 with f32 accumulation.
    return tuple(w.astype(jnp.bfloat16) for w in (w1, w2, w3, w4))


# ----------------------------- wrapper ---------------------------------------


@jax.jit
def cvae_forward(x, labels, eps, packed_weights):
    """x: [B, input_size], labels: [B, cond_size], eps: [B, HIDDEN] (all f32)."""
    B, input_size = x.shape
    cond_size = labels.shape[1]

    # batch tiling: tile is a multiple of 8 (f32 sublane); force >=2 grid steps at large
    # batch so v7x's two TensorCores both get a 'parallel' step.
    n_tiles = pl.cdiv(B, TB_CAP)
    if n_tiles < 2 and B >= 256:
        n_tiles = 2
    TB = _round_up(pl.cdiv(B, n_tiles), 8)
    Bp = n_tiles * TB

    # pack eps | x | labels | constant-1 bias lane into a single f32 stream
    a = jnp.zeros((Bp, PAD), jnp.float32)
    a = a.at[:B, :HIDDEN].set(eps.astype(jnp.float32))
    a = a.at[:B, HIDDEN:HIDDEN + input_size].set(x.astype(jnp.float32))
    a = a.at[:B, HIDDEN + input_size:HIDDEN + input_size + cond_size].set(
        labels.astype(jnp.float32))
    a = a.at[:, PAD - 1].set(1.0)

    act_spec = pl.BlockSpec((TB, PAD), lambda i: (i, 0))
    # weights: constant index maps keep them VMEM-resident across grid steps
    w_specs = [pl.BlockSpec(w.shape, lambda i: (0, 0)) for w in packed_weights]

    out_p = pl.pallas_call(
        cvae_kernel,
        out_shape=jax.ShapeDtypeStruct((Bp, PAD), jnp.float32),
        grid=(Bp // TB,),
        in_specs=[act_spec] + w_specs,
        out_specs=pl.BlockSpec((TB, PAD), lambda i: (i, 0)),
        compiler_params=pltpu.CompilerParams(
            dimension_semantics=("parallel",)),
    )(a, *packed_weights)

    # slice away batch/lane padding
    return out_p[:B, :input_size]


# ----------------------------- params & references ----------------------------


def init_params(key, input_size, cond_size):
    """Deterministic synthetic init (shapes follow the nn.Linear layers), stored [in, out]."""
    ks = jax.random.split(key, 10)

    def lin(kw, kb, fan_in, fan_out):
        bound = 1.0 / jnp.sqrt(jnp.float32(fan_in))
        w = jax.random.uniform(kw, (fan_in, fan_out), jnp.float32, -bound, bound)
        b = jax.random.uniform(kb, (1, fan_out), jnp.float32, -bound, bound)
        return w, b

    w1, b1 = lin(ks[0], ks[1], input_size + cond_size, H1)
    w21, b21 = lin(ks[2], ks[3], H1, HIDDEN)
    w22, b22 = lin(ks[4], ks[5], H1, HIDDEN)
    w3, b3 = lin(ks[6], ks[7], HIDDEN, H1)
    w4, b4 = lin(ks[8], ks[9], H1, input_size)
    return {"w1": w1, "b1": b1, "w21": w21, "b21": b21, "w22": w22, "b22": b22,
            "w3": w3, "b3": b3, "w4": w4, "b4": b4}


def cvae_reference_f32(x, labels, eps, p):
    """Pure-f32 JAX reference mirroring the PyTorch forward."""
    xc = jnp.concatenate([x, labels], axis=1)
    h1 = jax.nn.relu(xc @ p["w1"] + p["b1"])
    mu = h1 @ p["w21"] + p["b21"]
    logvar = h1 @ p["w22"] + p["b22"]
    z = eps * jnp.exp(0.5 * logvar) + mu
    h3 = jax.nn.relu(z @ p["w3"] + p["b3"])
    return h3 @ p["w4"] + p["b4"]


def cvae_reference_bf16(x, labels, eps, p):
    """Reference with the kernel's numerics: bf16 dot operands, f32 accumulation."""
    bf = lambda t: t.astype(jnp.bfloat16)
    f32 = lambda t: t.astype(jnp.bfloat16).astype(jnp.float32)
    dot = lambda l, r: jnp.dot(bf(l), bf(r), preferred_element_type=jnp.float32)
    xc = jnp.concatenate([x, labels], axis=1)
    h1 = jax.nn.relu(dot(xc, p["w1"]) + f32(p["b1"]))
    mu = dot(h1, p["w21"]) + f32(p["b21"])
    logvar = dot(h1, p["w22"]) + f32(p["b22"])
    z = eps * jnp.exp(0.5 * logvar) + mu
    h3 = jax.nn.relu(dot(z, p["w3"]) + f32(p["b3"]))
    return dot(h3, p["w4"]) + f32(p["b4"])


if __name__ == "__main__":
    batch, input_size, cond_size = 8, 32, 8

    key = jax.random.PRNGKey(0)
    kx, kl, ke, kp = jax.random.split(key, 4)
    x = jax.random.normal(kx, (batch, input_size), jnp.float32)
    labels = jax.random.normal(kl, (batch, cond_size), jnp.float32)
    # TODO(synk): torch.randn_like inside reparameterize() has no in-kernel equivalent;
    # eps is drawn deterministically here and passed in.
    eps = jax.random.normal(ke, (batch, HIDDEN), jnp.float32)

    params = init_params(kp, input_size, cond_size)
    packed = pack_params(params, input_size, cond_size)   # hoisted: pack ONCE, reuse

    out = jax.block_until_ready(cvae_forward(x, labels, eps, packed))
    assert out.shape == (batch, input_size)

    # parity vs a bf16-matched reference (kernel uses bf16 operands, f32 accumulation)
    ref_bf16 = cvae_reference_bf16(x, labels, eps, params)
    assert jnp.allclose(out, ref_bf16, atol=2e-3, rtol=2e-3), "mismatch vs bf16 reference"
    # loose sanity vs the pure-f32 reference (bf16 rounding is the only difference)
    ref_f32 = cvae_reference_f32(x, labels, eps, params)
    assert jnp.max(jnp.abs(out - ref_f32)) < 0.25, "gross mismatch vs f32 reference"

    print("KERNEL_OK")
</pallas_src>

<mosaic_0001>
module attributes {stable_mosaic.version = 11 : i64} {
  func.func @cvae_kernel(%arg0: i32, %arg1: memref<8x128xf32, #tpu.memory_space<vmem>>, %arg2: memref<128x128xbf16, #tpu.memory_space<vmem>>, %arg3: memref<128x256xbf16, #tpu.memory_space<vmem>>, %arg4: memref<128x128xbf16, #tpu.memory_space<vmem>>, %arg5: memref<128x128xbf16, #tpu.memory_space<vmem>>, %arg6: memref<8x128xf32, #tpu.memory_space<vmem>>) attributes {dimension_semantics = [#tpu.dimension_semantics<parallel>], iteration_bounds = array<i64: 1>, scalar_prefetch = 0 : i64, scratch_operands = 0 : i64, tpu.core_type = #tpu.core_type<tc>, window_params = [{transform_indices = @transform_0, window_bounds = array<i64: 8, 128>}, {pipeline_mode = #tpu.pipeline_mode<synchronous>, transform_indices = @transform_1, window_bounds = array<i64: 128, 128>}, {pipeline_mode = #tpu.pipeline_mode<synchronous>, transform_indices = @transform_2, window_bounds = array<i64: 128, 256>}, {pipeline_mode = #tpu.pipeline_mode<synchronous>, transform_indices = @transform_3, window_bounds = array<i64: 128, 128>}, {pipeline_mode = #tpu.pipeline_mode<synchronous>, transform_indices = @transform_4, window_bounds = array<i64: 128, 128>}, {transform_indices = @transform_5, window_bounds = array<i64: 8, 128>}]} {
    %c0 = arith.constant 0 : index
    %c0_0 = arith.constant 0 : index
    %0 = vector.load %arg1[%c0, %c0_0] : memref<8x128xf32, #tpu.memory_space<vmem>>, vector<8x128xf32>
    %1 = arith.truncf %0 : vector<8x128xf32> to vector<8x128xbf16>
    %c0_1 = arith.constant 0 : index
    %c0_2 = arith.constant 0 : index
    %2 = vector.load %arg2[%c0_1, %c0_2] : memref<128x128xbf16, #tpu.memory_space<vmem>>, vector<128x128xbf16>
    %cst = arith.constant dense<0.000000e+00> : vector<8x128xf32>
    %3 = tpu.matmul %1, %2, %cst {dimension_numbers = #tpu.dot_dimension_numbers<[1], [0], [0], [1], [0, 0, 1, 1], [], []>} : vector<8x128xbf16>, vector<128x128xbf16>, vector<8x128xf32> -> vector<8x128xf32>
    %cst_3 = arith.constant 0.000000e+00 : f32
    %4 = vector.broadcast %cst_3 : f32 to vector<8x128xf32>
    %5 = arith.maximumf %3, %4 : vector<8x128xf32>
    %6 = arith.truncf %5 : vector<8x128xf32> to vector<8x128xbf16>
    %c0_4 = arith.constant 0 : index
    %c0_5 = arith.constant 0 : index
    %7 = vector.load %arg3[%c0_4, %c0_5] : memref<128x256xbf16, #tpu.memory_space<vmem>>, vector<128x256xbf16>
    %cst_6 = arith.constant dense<0.000000e+00> : vector<8x256xf32>
    %8 = tpu.matmul %6, %7, %cst_6 {dimension_numbers = #tpu.dot_dimension_numbers<[1], [0], [0], [1], [0, 0, 1, 1], [], []>} : vector<8x128xbf16>, vector<128x256xbf16>, vector<8x256xf32> -> vector<8x256xf32>
    %9 = vector.extract_strided_slice %8 {offsets = [0, 0], sizes = [8, 128], strides = [1, 1]} : vector<8x256xf32> to vector<8x128xf32>
    %10 = vector.extract_strided_slice %8 {offsets = [0, 128], sizes = [8, 128], strides = [1, 1]} : vector<8x256xf32> to vector<8x128xf32>
    %cst_7 = arith.constant 5.000000e-01 : f32
    %11 = vector.broadcast %cst_7 : f32 to vector<8x128xf32>
    %12 = arith.mulf %11, %10 : vector<8x128xf32>
    %13 = math.exp %12 : vector<8x128xf32>
    %14 = arith.mulf %0, %13 : vector<8x128xf32>
    %15 = arith.addf %14, %9 : vector<8x128xf32>
    %16 = arith.truncf %15 : vector<8x128xf32> to vector<8x128xbf16>
    %c0_8 = arith.constant 0 : index
    %c0_9 = arith.constant 0 : index
    %17 = vector.load %arg4[%c0_8, %c0_9] : memref<128x128xbf16, #tpu.memory_space<vmem>>, vector<128x128xbf16>
    %cst_10 = arith.constant dense<0.000000e+00> : vector<8x128xf32>
    %18 = tpu.matmul %16, %17, %cst_10 {dimension_numbers = #tpu.dot_dimension_numbers<[1], [0], [0], [1], [0, 0, 1, 1], [], []>} : vector<8x128xbf16>, vector<128x128xbf16>, vector<8x128xf32> -> vector<8x128xf32>
    %cst_11 = arith.constant 0.000000e+00 : f32
    %19 = vector.broadcast %cst_11 : f32 to vector<8x128xf32>
    %20 = arith.maximumf %18, %19 : vector<8x128xf32>
    %21 = arith.truncf %20 : vector<8x128xf32> to vector<8x128xbf16>
    %c0_12 = arith.constant 0 : index
    %c0_13 = arith.constant 0 : index
    %22 = vector.load %arg5[%c0_12, %c0_13] : memref<128x128xbf16, #tpu.memory_space<vmem>>, vector<128x128xbf16>
    %cst_14 = arith.constant dense<0.000000e+00> : vector<8x128xf32>
    %23 = tpu.matmul %21, %22, %cst_14 {dimension_numbers = #tpu.dot_dimension_numbers<[1], [0], [0], [1], [0, 0, 1, 1], [], []>} : vector<8x128xbf16>, vector<128x128xbf16>, vector<8x128xf32> -> vector<8x128xf32>
    %c0_15 = arith.constant 0 : index
    %c0_16 = arith.constant 0 : index
    %24 = vector.load %arg6[%c0_15, %c0_16] : memref<8x128xf32, #tpu.memory_space<vmem>>, vector<8x128xf32>
    tpu.vector_store %arg6[%c0_15, %c0_16], %23 {strides = array<i32>} : memref<8x128xf32, #tpu.memory_space<vmem>>, vector<8x128xf32>,
    return
  }
  func.func @transform_0(%arg0: i32) -> (i32, i32) {
    %c0_i32 = arith.constant 0 : i32
    %c0_i32_0 = arith.constant 0 : i32
    return %arg0, %c0_i32 : i32, i32
  }
  func.func @transform_1(%arg0: i32) -> (i32, i32) {
    %c0_i32 = arith.constant 0 : i32
    %c0_i32_0 = arith.constant 0 : i32
    %c0_i32_1 = arith.constant 0 : i32
    return %c0_i32, %c0_i32_0 : i32, i32
  }
  func.func @transform_2(%arg0: i32) -> (i32, i32) {
    %c0_i32 = arith.constant 0 : i32
    %c0_i32_0 = arith.constant 0 : i32
    %c0_i32_1 = arith.constant 0 : i32
    return %c0_i32, %c0_i32_0 : i32, i32
  }
  func.func @transform_3(%arg0: i32) -> (i32, i32) {
    %c0_i32 = arith.constant 0 : i32
    %c0_i32_0 = arith.constant 0 : i32
    %c0_i32_1 = arith.constant 0 : i32
    return %c0_i32, %c0_i32_0 : i32, i32
  }
  func.func @transform_4(%arg0: i32) -> (i32, i32) {
    %c0_i32 = arith.constant 0 : i32
    %c0_i32_0 = arith.constant 0 : i32
    %c0_i32_1 = arith.constant 0 : i32
    return %c0_i32, %c0_i32_0 : i32, i32
  }
  func.func @transform_5(%arg0: i32) -> (i32, i32) {
    %c0_i32 = arith.constant 0 : i32
    %c0_i32_0 = arith.constant 0 : i32
    return %arg0, %c0_i32 : i32, i32
  }
}

</mosaic_0001>

<llo_original>
// kernel: cvae_forward.1
$region0: #{cvae_forward.1}
  #allocation0 [shape = 'u32[]', space=smem, size = 0x4, offset = 0x4, fixed_abs, tag = 'smem constant byte address 0x4 - core index']
  #allocation1 [shape = 'u32[144,128]{1,0:T(1,128)}', space=vmem, size = 0x12000, scoped, tag = 'internal scratch']
  %s0 = inlined_call_operand.vmem [shape: f32[8,128], index: 0, kind: input, shape index: {}]
  %s1 = inlined_call_operand.hbm [shape: bf16[128,128], index: 1, kind: input, shape index: {}]
  %s2 = inlined_call_operand.vmem [shape: bf16[128,256], index: 2, kind: input, shape index: {}]
  %s3 = inlined_call_operand.hbm [shape: bf16[128,128], index: 3, kind: input, shape index: {}]
  %s4 = inlined_call_operand.hbm [shape: bf16[128,128], index: 4, kind: input, shape index: {}]
  %s5 = inlined_call_operand.hbm [shape: f32[8,128], index: 5, kind: output, shape index: {}]
  %s6 = sld [smem:[#allocation0]]
  $region42: #{cvae_forward.1} parent=0
    _
  %s8 = ssub.s32 1, %s6
  %s9 = scalar_select 0, %s8, %s6
  $region1: #{cvae_forward.1} parent=0
    #allocation2 [shape = 'u8[32768]{0}', space=vmem, size = 0x8000, scoped, tag = 'input window, operand 1, single buffered']
    #allocation3 [shape = 's32[1]{0}', space=sflag, size = 0x4, scoped, tag = 'scoped memory for cvae_forward.1']
    #allocation4 [shape = 's32[1]{0}', space=sflag, size = 0x4, scoped, tag = 'scoped memory for cvae_forward.1']
    #allocation5 [shape = 'u8[32768]{0}', space=vmem, size = 0x8000, scoped, tag = 'input window, operand 3, single buffered']
    #allocation6 [shape = 's32[1]{0}', space=sflag, size = 0x4, scoped, tag = 'scoped memory for cvae_forward.1']
    #allocation7 [shape = 'u8[32768]{0}', space=vmem, size = 0x8000, scoped, tag = 'input window, operand 4, single buffered']
    #allocation8 [shape = 'u8[4096]{0}', space=vmem, size = 0x1000, scoped, tag = 'output window, operand 0, single buffered']
    %10 = vsyncpa [#allocation3], 0
    %11 = vsyncpa [#allocation6], 0
    %12 = vsyncpa [#allocation4], 0
    // Predicated region
    $region2: #{cvae_forward.1} parent=1 // pred_check
      _
    $region3: #{cvae_forward.1} parent=1 // pred_check_branch
      %14 = sbr.rel (0) target = $region5
    $region4: #{cvae_forward.1} parent=1 // pred_region
      _
    $region5: #{cvae_forward.1} parent=1 // pred_fallthru
      _
    // Predicated region
    $region6: #{cvae_forward.1} parent=1 // pred_check
      _
    $region7: #{cvae_forward.1} parent=1 // pred_check_branch
      %16 = sbr.rel (0) target = $region9
    $region8: #{cvae_forward.1} parent=1 // pred_region
      %s18 = ssub.s32 1024, 1024
      %19 = vsyncadd [#allocation3], %s18
      %s20 = sshll.u32 [#allocation2], 4
      %s21 = int_to_ptr.vmem [resolvable:$true] %s20
      %26 = dma.hbm_to_vmem [thread:$0]  %s1, 1024, %s21, [#allocation3], 64, 64, 4
    $region9: #{cvae_forward.1} parent=1 // pred_fallthru
      _
    // Predicated region
    $region10: #{cvae_forward.1} parent=1 // pred_check
      _
    $region11: #{cvae_forward.1} parent=1 // pred_check_branch
      %28 = sbr.rel (0) target = $region13
    $region12: #{cvae_forward.1} parent=1 // pred_region
      _
    $region13: #{cvae_forward.1} parent=1 // pred_fallthru
      _
    // Predicated region
    $region14: #{cvae_forward.1} parent=1 // pred_check
      _
    $region15: #{cvae_forward.1} parent=1 // pred_check_branch
      %30 = sbr.rel (0) target = $region17
    $region16: #{cvae_forward.1} parent=1 // pred_region
      %s32 = ssub.s32 1024, 1024
      %33 = vsyncadd [#allocation6], %s32
      %s34 = sshll.u32 [#allocation5], 4
      %s35 = int_to_ptr.vmem [resolvable:$true] %s34
      %40 = dma.hbm_to_vmem [thread:$0]  %s3, 1024, %s35, [#allocation6], 64, 64, 4
    $region17: #{cvae_forward.1} parent=1 // pred_fallthru
      _
    // Predicated region
    $region18: #{cvae_forward.1} parent=1 // pred_check
      _
    $region19: #{cvae_forward.1} parent=1 // pred_check_branch
      %42 = sbr.rel (0) target = $region21
    $region20: #{cvae_forward.1} parent=1 // pred_region
      %s44 = ssub.s32 1024, 1024
      %45 = vsyncadd [#allocation6], %s44
      %s46 = sshll.u32 [#allocation7], 4
      %s47 = int_to_ptr.vmem [resolvable:$true] %s46
      %52 = dma.hbm_to_vmem [thread:$0]  %s4, 1024, %s47, [#allocation6], 64, 64, 4
    $region21: #{cvae_forward.1} parent=1 // pred_fallthru
      _
    // Predicated region
    $region22: #{cvae_forward.1} parent=1 // pred_check
      _
    $region23: #{cvae_forward.1} parent=1 // pred_check_branch
      %54 = sbr.rel (0) target = $region25
    $region24: #{cvae_forward.1} parent=1 // pred_region
      %55 = dma.done [#allocation3], 1024
    $region25: #{cvae_forward.1} parent=1 // pred_fallthru
      _
    // Predicated region
    $region26: #{cvae_forward.1} parent=1 // pred_check
      _
    $region27: #{cvae_forward.1} parent=1 // pred_check_branch
      %57 = sbr.rel (0) target = $region29
    $region28: #{cvae_forward.1} parent=1 // pred_region
      %58 = dma.done [#allocation6], 1024
    $region29: #{cvae_forward.1} parent=1 // pred_fallthru
      _
    // Predicated region
    $region30: #{cvae_forward.1} parent=1 // pred_check
      _
    $region31: #{cvae_forward.1} parent=1 // pred_check_branch
      %60 = sbr.rel (0) target = $region33
    $region32: #{cvae_forward.1} parent=1 // pred_region
      %61 = dma.done [#allocation6], 1024
    $region33: #{cvae_forward.1} parent=1 // pred_fallthru
      _
    %v63 = vld [vmem:[%s0] sm:$0xff]
    %v64 = vpack.c.bf16 %v63, %v63
    %v65 = vld [vmem:[#allocation2] sm:$0xf]
    %v66 = vld [vmem:[#allocation2 + $0x4] sm:$0xf]
    %v67 = vld [vmem:[#allocation2 + $0x8] sm:$0xf]
    %v68 = vld [vmem:[#allocation2 + $0xc] sm:$0xf]
    %v69 = vld [vmem:[#allocation2 + $0x10] sm:$0xf]
    %v70 = vld [vmem:[#allocation2 + $0x14] sm:$0xf]
    %v71 = vld [vmem:[#allocation2 + $0x18] sm:$0xf]
    %v72 = vld [vmem:[#allocation2 + $0x1c] sm:$0xf]
    %v73 = vld [vmem:[#allocation2 + $0x20] sm:$0xf]
    %v74 = vld [vmem:[#allocation2 + $0x24] sm:$0xf]
    %v75 = vld [vmem:[#allocation2 + $0x28] sm:$0xf]
    %v76 = vld [vmem:[#allocation2 + $0x2c] sm:$0xf]
    %v77 = vld [vmem:[#allocation2 + $0x30] sm:$0xf]
    %v78 = vld [vmem:[#allocation2 + $0x34] sm:$0xf]
    %v79 = vld [vmem:[#allocation2 + $0x38] sm:$0xf]
    %v80 = vld [vmem:[#allocation2 + $0x3c] sm:$0xf]
    %v97 = vunpack.c.l.b16 %v65
    %v98 = vunpack.c.l.b16 %v66
    %v99 = vunpack.c.l.b16 %v67
    %v100 = vunpack.c.l.b16 %v68
    %v101 = vunpack.c.l.b16 %v69
    %v102 = vunpack.c.l.b16 %v70
    %v103 = vunpack.c.l.b16 %v71
    %v104 = vunpack.c.l.b16 %v72
    %v105 = vunpack.c.l.b16 %v73
    %v106 = vunpack.c.l.b16 %v74
    %v107 = vunpack.c.l.b16 %v75
    %v108 = vunpack.c.l.b16 %v76
    %v109 = vunpack.c.l.b16 %v77
    %v110 = vunpack.c.l.b16 %v78
    %v111 = vunpack.c.l.b16 %v79
    %v112 = vunpack.c.l.b16 %v80
    %v113 = vpack.c.b16 %v98, %v97
    %v114 = vpack.c.b16 %v100, %v99
    %v115 = vpack.c.b16 %v102, %v101
    %v116 = vpack.c.b16 %v104, %v103
    %v117 = vpack.c.b16 %v106, %v105
    %v118 = vpack.c.b16 %v108, %v107
    %v119 = vpack.c.b16 %v110, %v109
    %v120 = vpack.c.b16 %v112, %v111
    %129 = vmatprep.subr.bf16.mxu0 0
    %130 = vmatpush1.bf16.msra.mxu0 %v113
    %131 = vmatprep.subr.bf16.mxu0 0
    %132 = vmatpush1.bf16.msra.mxu0 %v114
    %133 = vmatprep.subr.bf16.mxu0 0
    %134 = vmatpush1.bf16.msra.mxu0 %v115
    %135 = vmatprep.subr.bf16.mxu0 0
    %136 = vmatpush1.bf16.msra.mxu0 %v116
    %137 = vmatprep.subr.bf16.mxu0 0
    %138 = vmatpush1.bf16.msra.mxu0 %v117
    %139 = vmatprep.subr.bf16.mxu0 0
    %140 = vmatpush1.bf16.msra.mxu0 %v118
    %141 = vmatprep.subr.bf16.mxu0 0
    %142 = vmatpush1.bf16.msra.mxu0 %v119
    %143 = vmatprep.subr.bf16.mxu0 0
    %144 = vmatpush1.bf16.msra.mxu0 %v120
    %145 = vmatprep.subr.bf16.mxu0 0
    %146 = vmatpush1.bf16.msra.mxu0 0
    %147 = vmatprep.subr.bf16.mxu0 0
    %148 = vmatpush1.bf16.msra.mxu0 0
    %149 = vmatprep.subr.bf16.mxu0 0
    %150 = vmatpush1.bf16.msra.mxu0 0
    %151 = vmatprep.subr.bf16.mxu0 0
    %152 = vmatpush1.bf16.msra.mxu0 0
    %153 = vmatprep.subr.bf16.mxu0 0
    %154 = vmatpush1.bf16.msra.mxu0 0
    %155 = vmatprep.subr.bf16.mxu0 0
    %156 = vmatpush1.bf16.msra.mxu0 0
    %157 = vmatprep.subr.bf16.mxu0 0
    %158 = vmatpush1.bf16.msra.mxu0 0
    %159 = vmatprep.subr.bf16.mxu0 0
    %160 = vmatpush1.bf16.msra.mxu0 0
    %161 = vmatprep.mubr.bf16.mxu0 0
    %162 = vmatmul.mubr.bf16.gmra.mrb[0].mxu0 %v64
    %v163 = vpop.f32.mrb[0].mxu0
    %v164 = vadd.f32 0.0, %v163
    %v165 = vpop.f32.mrb[0].mxu0
    %v166 = vpop.f32.mrb[0].mxu0
    %v167 = vpop.f32.mrb[0].mxu0
    %168 = vdwg.mxu0
    %v169 = vmax.f32 %v164, 0.0
    %v170 = vpack.c.bf16 %v169, %v169
    %v171 = vld [vmem:[%s2] sm:$0xff]
    %v172 = vld [vmem:[%s2 + $0x8] sm:$0xff]
    %v173 = vld [vmem:[%s2 + $0x10] sm:$0xff]
    %v174 = vld [vmem:[%s2 + $0x18] sm:$0xff]
    %v175 = vld [vmem:[%s2 + $0x20] sm:$0xff]
    %v176 = vld [vmem:[%s2 + $0x28] sm:$0xff]
    %v177 = vld [vmem:[%s2 + $0x30] sm:$0xff]
    %v178 = vld [vmem:[%s2 + $0x38] sm:$0xff]
    %v179 = vld [vmem:[%s2 + $0x40] sm:$0xff]
    %v180 = vld [vmem:[%s2 + $0x48] sm:$0xff]
    %v181 = vld [vmem:[%s2 + $0x50] sm:$0xff]
    %v182 = vld [vmem:[%s2 + $0x58] sm:$0xff]
    %v183 = vld [vmem:[%s2 + $0x60] sm:$0xff]
    %v184 = vld [vmem:[%s2 + $0x68] sm:$0xff]
    %v185 = vld [vmem:[%s2 + $0x70] sm:$0xff]
    %v186 = vld [vmem:[%s2 + $0x78] sm:$0xff]
    %v203 = vunpack.c.l.b16 %v171
    %v204 = vunpack.c.h.b16 %v171
    %v205 = vunpack.c.l.b16 %v172
    %v206 = vunpack.c.h.b16 %v172
    %v207 = vunpack.c.l.b16 %v173
    %v208 = vunpack.c.h.b16 %v173
    %v209 = vunpack.c.l.b16 %v174
    %v210 = vunpack.c.h.b16 %v174
    %v211 = vunpack.c.l.b16 %v175
    %v212 = vunpack.c.h.b16 %v175
    %v213 = vunpack.c.l.b16 %v176
    %v214 = vunpack.c.h.b16 %v176
    %v215 = vunpack.c.l.b16 %v177
    %v216 = vunpack.c.h.b16 %v177
    %v217 = vunpack.c.l.b16 %v178
    %v218 = vunpack.c.h.b16 %v178
    %v219 = vunpack.c.l.b16 %v179
    %v220 = vunpack.c.h.b16 %v179
    %v221 = vunpack.c.l.b16 %v180
    %v222 = vunpack.c.h.b16 %v180
    %v223 = vunpack.c.l.b16 %v181
    %v224 = vunpack.c.h.b16 %v181
    %v225 = vunpack.c.l.b16 %v182
    %v226 = vunpack.c.h.b16 %v182
    %v227 = vunpack.c.l.b16 %v183
    %v228 = vunpack.c.h.b16 %v183
    %v229 = vunpack.c.l.b16 %v184
    %v230 = vunpack.c.h.b16 %v184
    %v231 = vunpack.c.l.b16 %v185
    %v232 = vunpack.c.h.b16 %v185
    %v233 = vunpack.c.l.b16 %v186
    %v234 = vunpack.c.h.b16 %v186
    %v235 = vpack.c.b16 %v205, %v203
    %v236 = vpack.c.b16 %v206, %v204
    %v237 = vpack.c.b16 %v209, %v207
    %v238 = vpack.c.b16 %v210, %v208
    %v239 = vpack.c.b16 %v213, %v211
    %v240 = vpack.c.b16 %v214, %v212
    %v241 = vpack.c.b16 %v217, %v215
    %v242 = vpack.c.b16 %v218, %v216
    %v243 = vpack.c.b16 %v221, %v219
    %v244 = vpack.c.b16 %v222, %v220
    %v245 = vpack.c.b16 %v225, %v223
    %v246 = vpack.c.b16 %v226, %v224
    %v247 = vpack.c.b16 %v229, %v227
    %v248 = vpack.c.b16 %v230, %v228
    %v249 = vpack.c.b16 %v233, %v231
    %v250 = vpack.c.b16 %v234, %v232
    %267 = vmatprep.subr.bf16.mxu0 %v236
    %268 = vmatpush1.bf16.msra.mxu0 %v235
    %269 = vmatprep.subr.bf16.mxu0 %v238
    %270 = vmatpush1.bf16.msra.mxu0 %v237
    %271 = vmatprep.subr.bf16.mxu0 %v240
    %272 = vmatpush1.bf16.msra.mxu0 %v239
    %273 = vmatprep.subr.bf16.mxu0 %v242
    %274 = vmatpush1.bf16.msra.mxu0 %v241
    %275 = vmatprep.subr.bf16.mxu0 %v244
    %276 = vmatpush1.bf16.msra.mxu0 %v243
    %277 = vmatprep.subr.bf16.mxu0 %v246
    %278 = vmatpush1.bf16.msra.mxu0 %v245
    %279 = vmatprep.subr.bf16.mxu0 %v248
    %280 = vmatpush1.bf16.msra.mxu0 %v247
    %281 = vmatprep.subr.bf16.mxu0 %v250
    %282 = vmatpush1.bf16.msra.mxu0 %v249
    %283 = vmatprep.subr.bf16.mxu0 0
    %284 = vmatpush1.bf16.msra.mxu0 0
    %285 = vmatprep.subr.bf16.mxu0 0
    %286 = vmatpush1.bf16.msra.mxu0 0
    %287 = vmatprep.subr.bf16.mxu0 0
    %288 = vmatpush1.bf16.msra.mxu0 0
    %289 = vmatprep.subr.bf16.mxu0 0
    %290 = vmatpush1.bf16.msra.mxu0 0
    %291 = vmatprep.subr.bf16.mxu0 0
    %292 = vmatpush1.bf16.msra.mxu0 0
    %293 = vmatprep.subr.bf16.mxu0 0
    %294 = vmatpush1.bf16.msra.mxu0 0
    %295 = vmatprep.subr.bf16.mxu0 0
    %296 = vmatpush1.bf16.msra.mxu0 0
    %297 = vmatprep.subr.bf16.mxu0 0
    %298 = vmatpush1.bf16.msra.mxu0 0
    %299 = vmatprep.mubr.bf16.mxu0 0
    %300 = vmatmul.mubr.bf16.gmra.mrb[0].mxu0 %v170
    %v301 = vpop.f32.mrb[0].mxu0
    %v302 = vadd.f32 0.0, %v301
    %v303 = vpop.f32.mrb[0].mxu0
    %v304 = vadd.f32 0.0, %v303
    %v305 = vpop.f32.mrb[0].mxu0
    %v306 = vpop.f32.mrb[0].mxu0
    %307 = vdwg.mxu0
    %v308 = vmul.f32 %v304, 0.5
    %v309 = vmul.f32 %v308, 1.442695
    %v310 = vpow.pop %v309
    %v311 = vmul.f32 %v63, %v310
    %v312 = vadd.f32 %v311, %v302
    %v313 = vpack.c.bf16 %v312, %v312
    %v314 = vld [vmem:[#allocation5] sm:$0xf]
    %v315 = vld [vmem:[#allocation5 + $0x4] sm:$0xf]
    %v316 = vld [vmem:[#allocation5 + $0x8] sm:$0xf]
    %v317 = vld [vmem:[#allocation5 + $0xc] sm:$0xf]
    %v318 = vld [vmem:[#allocation5 + $0x10] sm:$0xf]
    %v319 = vld [vmem:[#allocation5 + $0x14] sm:$0xf]
    %v320 = vld [vmem:[#allocation5 + $0x18] sm:$0xf]
    %v321 = vld [vmem:[#allocation5 + $0x1c] sm:$0xf]
    %v322 = vld [vmem:[#allocation5 + $0x20] sm:$0xf]
    %v323 = vld [vmem:[#allocation5 + $0x24] sm:$0xf]
    %v324 = vld [vmem:[#allocation5 + $0x28] sm:$0xf]
    %v325 = vld [vmem:[#allocation5 + $0x2c] sm:$0xf]
    %v326 = vld [vmem:[#allocation5 + $0x30] sm:$0xf]
    %v327 = vld [vmem:[#allocation5 + $0x34] sm:$0xf]
    %v328 = vld [vmem:[#allocation5 + $0x38] sm:$0xf]
    %v329 = vld [vmem:[#allocation5 + $0x3c] sm:$0xf]
    %v346 = vunpack.c.l.b16 %v314
    %v347 = vunpack.c.l.b16 %v315
    %v348 = vunpack.c.l.b16 %v316
    %v349 = vunpack.c.l.b16 %v317
    %v350 = vunpack.c.l.b16 %v318
    %v351 = vunpack.c.l.b16 %v319
    %v352 = vunpack.c.l.b16 %v320
    %v353 = vunpack.c.l.b16 %v321
    %v354 = vunpack.c.l.b16 %v322
    %v355 = vunpack.c.l.b16 %v323
    %v356 = vunpack.c.l.b16 %v324
    %v357 = vunpack.c.l.b16 %v325
    %v358 = vunpack.c.l.b16 %v326
    %v359 = vunpack.c.l.b16 %v327
    %v360 = vunpack.c.l.b16 %v328
    %v361 = vunpack.c.l.b16 %v329
    %v362 = vpack.c.b16 %v347, %v346
    %v363 = vpack.c.b16 %v349, %v348
    %v364 = vpack.c.b16 %v351, %v350
    %v365 = vpack.c.b16 %v353, %v352
    %v366 = vpack.c.b16 %v355, %v354
    %v367 = vpack.c.b16 %v357, %v356
    %v368 = vpack.c.b16 %v359, %v358
    %v369 = vpack.c.b16 %v361, %v360
    %378 = vmatprep.subr.bf16.mxu0 0
    %379 = vmatpush1.bf16.msra.mxu0 %v362
    %380 = vmatprep.subr.bf16.mxu0 0
    %381 = vmatpush1.bf16.msra.mxu0 %v363
    %382 = vmatprep.subr.bf16.mxu0 0
    %383 = vmatpush1.bf16.msra.mxu0 %v364
    %384 = vmatprep.subr.bf16.mxu0 0
    %385 = vmatpush1.bf16.msra.mxu0 %v365
    %386 = vmatprep.subr.bf16.mxu0 0
    %387 = vmatpush1.bf16.msra.mxu0 %v366
    %388 = vmatprep.subr.bf16.mxu0 0
    %389 = vmatpush1.bf16.msra.mxu0 %v367
    %390 = vmatprep.subr.bf16.mxu0 0
    %391 = vmatpush1.bf16.msra.mxu0 %v368
    %392 = vmatprep.subr.bf16.mxu0 0
    %393 = vmatpush1.bf16.msra.mxu0 %v369
    %394 = vmatprep.subr.bf16.mxu0 0
    %395 = vmatpush1.bf16.msra.mxu0 0
    %396 = vmatprep.subr.bf16.mxu0 0
    %397 = vmatpush1.bf16.msra.mxu0 0
    %398 = vmatprep.subr.bf16.mxu0 0
    %399 = vmatpush1.bf16.msra.mxu0 0
    %400 = vmatprep.subr.bf16.mxu0 0
    %401 = vmatpush1.bf16.msra.mxu0 0
    %402 = vmatprep.subr.bf16.mxu0 0
    %403 = vmatpush1.bf16.msra.mxu0 0
    %404 = vmatprep.subr.bf16.mxu0 0
    %405 = vmatpush1.bf16.msra.mxu0 0
    %406 = vmatprep.subr.bf16.mxu0 0
    %407 = vmatpush1.bf16.msra.mxu0 0
    %408 = vmatprep.subr.bf16.mxu0 0
    %409 = vmatpush1.bf16.msra.mxu0 0
    %410 = vmatprep.mubr.bf16.mxu0 0
    %411 = vmatmul.mubr.bf16.gmra.mrb[0].mxu0 %v313
    %v412 = vpop.f32.mrb[0].mxu0
    %v413 = vadd.f32 0.0, %v412
    %v414 = vpop.f32.mrb[0].mxu0
    %v415 = vpop.f32.mrb[0].mxu0
    %v416 = vpop.f32.mrb[0].mxu0
    %417 = vdwg.mxu0
    %v418 = vmax.f32 %v413, 0.0
    %v419 = vpack.c.bf16 %v418, %v418
    %v420 = vld [vmem:[#allocation7] sm:$0xf]
    %v421 = vld [vmem:[#allocation7 + $0x4] sm:$0xf]
    %v422 = vld [vmem:[#allocation7 + $0x8] sm:$0xf]
    %v423 = vld [vmem:[#allocation7 + $0xc] sm:$0xf]
    %v424 = vld [vmem:[#allocation7 + $0x10] sm:$0xf]
    %v425 = vld [vmem:[#allocation7 + $0x14] sm:$0xf]
    %v426 = vld [vmem:[#allocation7 + $0x18] sm:$0xf]
    %v427 = vld [vmem:[#allocation7 + $0x1c] sm:$0xf]
    %v428 = vld [vmem:[#allocation7 + $0x20] sm:$0xf]
    %v429 = vld [vmem:[#allocation7 + $0x24] sm:$0xf]
    %v430 = vld [vmem:[#allocation7 + $0x28] sm:$0xf]
    %v431 = vld [vmem:[#allocation7 + $0x2c] sm:$0xf]
    %v432 = vld [vmem:[#allocation7 + $0x30] sm:$0xf]
    %v433 = vld [vmem:[#allocation7 + $0x34] sm:$0xf]
    %v434 = vld [vmem:[#allocation7 + $0x38] sm:$0xf]
    %v435 = vld [vmem:[#allocation7 + $0x3c] sm:$0xf]
    %v452 = vunpack.c.l.b16 %v420
    %v453 = vunpack.c.l.b16 %v421
    %v454 = vunpack.c.l.b16 %v422
    %v455 = vunpack.c.l.b16 %v423
    %v456 = vunpack.c.l.b16 %v424
    %v457 = vunpack.c.l.b16 %v425
    %v458 = vunpack.c.l.b16 %v426
    %v459 = vunpack.c.l.b16 %v427
    %v460 = vunpack.c.l.b16 %v428
    %v461 = vunpack.c.l.b16 %v429
    %v462 = vunpack.c.l.b16 %v430
    %v463 = vunpack.c.l.b16 %v431
    %v464 = vunpack.c.l.b16 %v432
    %v465 = vunpack.c.l.b16 %v433
    %v466 = vunpack.c.l.b16 %v434
    %v467 = vunpack.c.l.b16 %v435
    %v468 = vpack.c.b16 %v453, %v452
    %v469 = vpack.c.b16 %v455, %v454
    %v470 = vpack.c.b16 %v457, %v456
    %v471 = vpack.c.b16 %v459, %v458
    %v472 = vpack.c.b16 %v461, %v460
    %v473 = vpack.c.b16 %v463, %v462
    %v474 = vpack.c.b16 %v465, %v464
    %v475 = vpack.c.b16 %v467, %v466
    %484 = vmatprep.subr.bf16.mxu0 0
    %485 = vmatpush1.bf16.msra.mxu0 %v468
    %486 = vmatprep.subr.bf16.mxu0 0
    %487 = vmatpush1.bf16.msra.mxu0 %v469
    %488 = vmatprep.subr.bf16.mxu0 0
    %489 = vmatpush1.bf16.msra.mxu0 %v470
    %490 = vmatprep.subr.bf16.mxu0 0
    %491 = vmatpush1.bf16.msra.mxu0 %v471
    %492 = vmatprep.subr.bf16.mxu0 0
    %493 = vmatpush1.bf16.msra.mxu0 %v472
    %494 = vmatprep.subr.bf16.mxu0 0
    %495 = vmatpush1.bf16.msra.mxu0 %v473
    %496 = vmatprep.subr.bf16.mxu0 0
    %497 = vmatpush1.bf16.msra.mxu0 %v474
    %498 = vmatprep.subr.bf16.mxu0 0
    %499 = vmatpush1.bf16.msra.mxu0 %v475
    %500 = vmatprep.subr.bf16.mxu0 0
    %501 = vmatpush1.bf16.msra.mxu0 0
    %502 = vmatprep.subr.bf16.mxu0 0
    %503 = vmatpush1.bf16.msra.mxu0 0
    %504 = vmatprep.subr.bf16.mxu0 0
    %505 = vmatpush1.bf16.msra.mxu0 0
    %506 = vmatprep.subr.bf16.mxu0 0
    %507 = vmatpush1.bf16.msra.mxu0 0
    %508 = vmatprep.subr.bf16.mxu0 0
    %509 = vmatpush1.bf16.msra.mxu0 0
    %510 = vmatprep.subr.bf16.mxu0 0
    %511 = vmatpush1.bf16.msra.mxu0 0
    %512 = vmatprep.subr.bf16.mxu0 0
    %513 = vmatpush1.bf16.msra.mxu0 0
    %514 = vmatprep.subr.bf16.mxu0 0
    %515 = vmatpush1.bf16.msra.mxu0 0
    %516 = vmatprep.mubr.bf16.mxu0 0
    %517 = vmatmul.mubr.bf16.gmra.mrb[0].mxu0 %v419
    %v518 = vpop.f32.mrb[0].mxu0
    %v519 = vadd.f32 0.0, %v518
    %v520 = vpop.f32.mrb[0].mxu0
    %v521 = vpop.f32.mrb[0].mxu0
    %v522 = vpop.f32.mrb[0].mxu0
    %523 = vdwg.mxu0
    %524 = vst [vmem:[#allocation8] sm:$0xff] %v519
    // Predicated region
    $region34: #{cvae_forward.1} parent=1 // pred_check
      _
    $region35: #{cvae_forward.1} parent=1 // pred_check_branch
      %526 = sbr.rel (0) target = $region37
    $region36: #{cvae_forward.1} parent=1 // pred_region
      %s528 = ssub.s32 128, 128
      %529 = vsyncadd [#allocation4], %s528
      %s531 = sshll.u32 [#allocation8], 4
      %s532 = int_to_ptr.vmem [resolvable:$true] %s531
      %534 = dma.vmem_to_hbm [thread:$0]  %s532, 128, %s5, [#allocation4]
    $region37: #{cvae_forward.1} parent=1 // pred_fallthru
      _
    // Predicated region
    $region38: #{cvae_forward.1} parent=1 // pred_check
      _
    $region39: #{cvae_forward.1} parent=1 // pred_check_branch
      %536 = sbr.rel (0) target = $region41
    $region40: #{cvae_forward.1} parent=1 // pred_region
      %537 = dma.done [#allocation4], 128
    $region41: #{cvae_forward.1} parent=1 // pred_fallthru
      _
    %538 = vsyncpa [#allocation3], 1
    %539 = vsyncpa [#allocation6], 1
    %540 = vsyncpa [#allocation4], 1

</llo_original>
